<compile_context>
chip_gen: v7x
topology: tpu7x:2x2x1
jax: 0.10.0
libtpu: 0.0.40
codegen_flags: <defaults>
</compile_context>

<pallas_src>
import functools

import jax
import jax.numpy as jnp
from jax.experimental import pallas as pl
from jax.experimental.pallas import tpu as pltpu

_LANES = 512                  # lane-dense slab width (multiple of 128)
_FAST_PATH_BYTES = 4 << 20    # below this, a fused XLA clamp is cheaper


def _clump_kernel(bounds_ref, x_ref, o_ref):
    # Pure VPU elementwise clamp on the whole VMEM tile.
    x = x_ref[...]
    lo = bounds_ref[0].astype(x.dtype)
    hi = bounds_ref[1].astype(x.dtype)
    o_ref[...] = jnp.minimum(jnp.maximum(x, lo), hi)


def _sublane_multiple(dtype) -> int:
    itemsize = jnp.dtype(dtype).itemsize
    if itemsize >= 4:
        return 8
    if itemsize == 2:
        return 16
    return 32


@functools.lru_cache(maxsize=1)
def _vmem_plan():
    """Generation-aware (tile_bytes, vmem_limit_bytes)."""
    phys = None
    try:
        info = pltpu.get_tpu_info()
        phys = getattr(info, "vmem_capacity_bytes", None)
    except Exception:
        phys = None
    if not phys:
        phys = 64 << 20  # conservative default: v7x has the smallest physical VMEM
    # Scoped-VMEM budget for this kernel: half of physical, capped at 32 MiB.
    limit = min(phys // 2, 32 << 20)
    # Double-buffered input + output = 4 live tiles; keep ~25% headroom.
    tile = (limit - limit // 4) // 4
    tile = max(1 << 20, min(tile, 8 << 20))
    return tile, limit


def clump(x: jax.Array, min_v=-50, max_v=50, *, use_pallas=None, tile_bytes=None) -> jax.Array:
    """Clamp x to [min_v, max_v]; Pallas TPU kernel for large aligned float inputs."""
    orig_shape = x.shape
    dtype = x.dtype
    itemsize = jnp.dtype(dtype).itemsize
    total = int(x.size)
    total_bytes = total * itemsize

    def _jnp_clamp(v):
        lo = jnp.asarray(min_v, dtype=dtype)
        hi = jnp.asarray(max_v, dtype=dtype)
        return jnp.minimum(jnp.maximum(v, lo), hi)

    aligned = total > 0 and total % _LANES == 0
    # Pallas path supports float tiles; integer/unsigned dtypes keep the jnp
    # path (avoids silent wrap of negative bounds on unsigned inputs).
    supported = dtype in (jnp.dtype(jnp.float32), jnp.dtype(jnp.bfloat16))

    if use_pallas is None:
        use_pallas = total_bytes >= _FAST_PATH_BYTES
    if not (use_pallas and aligned and supported):
        # Fused XLA clamp: zero extra HBM passes; best for small / ragged /
        # non-float inputs (and inside larger jit regions where it fuses).
        return _jnp_clamp(x)

    # ---- zero-copy lane-dense reshape: (rows, 512) ----
    cols = _LANES
    rows = total // cols
    x2 = x.reshape(rows, cols)

    # ---- generation-aware, byte-budgeted tile selection ----
    sub = _sublane_multiple(dtype)
    auto_tile, vmem_limit = _vmem_plan()
    if tile_bytes is None:
        tile_bytes = auto_tile

    row_bytes = cols * itemsize
    steps = max(2, pl.cdiv(rows * row_bytes, tile_bytes))
    if steps % 2:
        steps += 1                      # even step count -> balanced megacore split
    tile_rows = -(-rows // steps)       # ceil
    tile_rows = -(-tile_rows // sub) * sub  # round up to sublane multiple
    if tile_rows >= rows:
        tile_rows = rows                # block == full array dim: always legal

    grid = (pl.cdiv(rows, tile_rows),)

    # Runtime bound values in SMEM: reusable kernel across bound pairs.
    bounds = jnp.asarray([min_v, max_v], dtype=jnp.float32)

    out2 = pl.pallas_call(
        _clump_kernel,
        out_shape=jax.ShapeDtypeStruct((rows, cols), dtype),
        grid_spec=pltpu.PrefetchScalarGridSpec(
            num_scalar_prefetch=0,
            grid=grid,
            in_specs=[
                pl.BlockSpec(memory_space=pltpu.MemorySpace.SMEM),
                pl.BlockSpec((tile_rows, cols), lambda i: (i, 0)),
            ],
            out_specs=pl.BlockSpec((tile_rows, cols), lambda i: (i, 0)),
        ),
        compiler_params=pltpu.CompilerParams(
            dimension_semantics=("parallel",),
            vmem_limit_bytes=vmem_limit,
        ),
    )(bounds, x2)

    return out2.reshape(orig_shape)


if __name__ == "__main__":
    key = jax.random.PRNGKey(0)
    k1, k2, k3, k4 = jax.random.split(key, 4)

    # Canonical small NCHW input (batch=2, channels=4, spatial=16x16), scaled
    # so values fall outside [-50, 50].  Force the Pallas path.
    x_small = jax.random.normal(k1, (2, 4, 16, 16), dtype=jnp.float32) * 100.0
    y_small = jax.block_until_ready(clump(x_small, use_pallas=True))
    ref_small = jnp.clip(x_small, -50.0, 50.0)
    assert y_small.shape == x_small.shape and y_small.dtype == x_small.dtype
    assert bool(jnp.allclose(y_small, ref_small)), "mismatch (default bounds)"

    # Non-default bounds: runtime SMEM scalars, no recompile per bound pair.
    y_b = jax.block_until_ready(clump(x_small, -1.0, 1.0, use_pallas=True))
    assert bool(jnp.allclose(y_b, jnp.clip(x_small, -1.0, 1.0))), "mismatch (custom bounds)"

    # Medium aligned input (4 MiB): auto Pallas path, split into an even number
    # of tiles so both v7x TensorCores get balanced work.
    x_med = jax.random.normal(k2, (8, 16, 128, 64), dtype=jnp.float32) * 100.0
    y_med = jax.block_until_ready(clump(x_med))
    assert bool(jnp.allclose(y_med, jnp.clip(x_med, -50.0, 50.0))), "mismatch (medium)"

    # Ragged final grid block: small tile override -> grid=3 with a partially
    # covered last block (masked writes).
    x_rag_blk = jax.random.normal(k3, (40, 512), dtype=jnp.float32) * 100.0
    y_rag_blk = jax.block_until_ready(
        clump(x_rag_blk, use_pallas=True, tile_bytes=32 * 1024))
    assert bool(jnp.allclose(y_rag_blk, jnp.clip(x_rag_blk, -50.0, 50.0))), "mismatch (ragged block)"

    # Non-multiple-of-512 total: falls back to the fused XLA clamp (no
    # pad/slice HBM round trips).
    x_rag = jax.random.normal(k4, (3, 5, 7), dtype=jnp.float32) * 100.0
    y_rag = jax.block_until_ready(clump(x_rag, use_pallas=True))
    assert bool(jnp.allclose(y_rag, jnp.clip(x_rag, -50.0, 50.0))), "mismatch (ragged total)"

    # bfloat16 path (16-row sublane alignment), bounds cast in-kernel.
    x_bf = (jax.random.normal(k1, (4, 8, 64), dtype=jnp.float32) * 100.0).astype(jnp.bfloat16)
    y_bf = jax.block_until_ready(clump(x_bf, use_pallas=True))
    ref_bf = jnp.clip(x_bf.astype(jnp.float32), -50.0, 50.0)
    assert y_bf.dtype == jnp.bfloat16
    assert bool(jnp.allclose(y_bf.astype(jnp.float32), ref_bf)), "mismatch (bf16)"

    print("KERNEL_OK")
</pallas_src>

<mosaic_0001>
module attributes {stable_mosaic.version = 11 : i64} {
  func.func @_clump_kernel(%arg0: i32, %arg1: memref<2xf32, #tpu.memory_space<smem>>, %arg2: memref<4x512xf32, #tpu.memory_space<vmem>>, %arg3: memref<4x512xf32, #tpu.memory_space<vmem>>) attributes {dimension_semantics = [#tpu.dimension_semantics<parallel>], iteration_bounds = array<i64: 1>, scalar_prefetch = 0 : i64, scratch_operands = 0 : i64, tpu.core_type = #tpu.core_type<tc>, window_params = [{transform_indices = @transform_0, window_bounds = array<i64: 2>}, {transform_indices = @transform_1, window_bounds = array<i64: 4, 512>}, {transform_indices = @transform_2, window_bounds = array<i64: 4, 512>}]} {
    %c0 = arith.constant 0 : index
    %c0_0 = arith.constant 0 : index
    %0 = vector.load %arg2[%c0, %c0_0] : memref<4x512xf32, #tpu.memory_space<vmem>>, vector<4x512xf32>
    %c0_1 = arith.constant 0 : index
    %1 = memref.load %arg1[%c0_1] : memref<2xf32, #tpu.memory_space<smem>>
    %c1 = arith.constant 1 : index
    %2 = memref.load %arg1[%c1] : memref<2xf32, #tpu.memory_space<smem>>
    %3 = vector.broadcast %1 : f32 to vector<4x512xf32>
    %4 = arith.maximumf %0, %3 : vector<4x512xf32>
    %5 = vector.broadcast %2 : f32 to vector<4x512xf32>
    %6 = arith.minimumf %4, %5 : vector<4x512xf32>
    %c0_2 = arith.constant 0 : index
    %c0_3 = arith.constant 0 : index
    %7 = vector.load %arg3[%c0_2, %c0_3] : memref<4x512xf32, #tpu.memory_space<vmem>>, vector<4x512xf32>
    tpu.vector_store %arg3[%c0_2, %c0_3], %6 {strides = array<i32>} : memref<4x512xf32, #tpu.memory_space<vmem>>, vector<4x512xf32>,
    return
  }
  func.func @transform_0(%arg0: i32) -> i32 {
    %c0_i32 = arith.constant 0 : i32
    %c0_i32_0 = arith.constant 0 : i32
    return %c0_i32 : i32
  }
  func.func @transform_1(%arg0: i32) -> (i32, i32) {
    %c0_i32 = arith.constant 0 : i32
    %c0_i32_0 = arith.constant 0 : i32
    return %arg0, %c0_i32 : i32, i32
  }
  func.func @transform_2(%arg0: i32) -> (i32, i32) {
    %c0_i32 = arith.constant 0 : i32
    %c0_i32_0 = arith.constant 0 : i32
    return %arg0, %c0_i32 : i32, i32
  }
}

</mosaic_0001>

<llo_original>
// kernel: tpu_custom_call.1
$region0: #{tpu_custom_call.1}
  #allocation0 [shape = 'u32[]', space=smem, size = 0x4, offset = 0x4, fixed_abs, tag = 'smem constant byte address 0x4 - core index']
  #allocation1 [shape = 'u32[144,128]{1,0:T(1,128)}', space=vmem, size = 0x12000, scoped, tag = 'internal scratch']
  %s0 = inlined_call_operand.hbm [shape: f32[2], index: 0, kind: input, shape index: {}]
  %s1 = inlined_call_operand.hbm [shape: f32[4,512], index: 1, kind: input, shape index: {}]
  %s2 = inlined_call_operand.hbm [shape: f32[4,512], index: 2, kind: output, shape index: {}]
  %s3 = sld [smem:[#allocation0]]
  $region26: #{tpu_custom_call.1} parent=0
    _
  %s5 = ssub.s32 1, %s3
  %s6 = scalar_select 0, %s5, %s3
  $region1: #{tpu_custom_call.1} parent=0
    #allocation2 [shape = 'u8[512]{0}', space=smem, size = 0x200, scoped, tag = 'input window, operand 0, single buffered']
    #allocation3 [shape = 's32[1]{0}', space=sflag, size = 0x4, scoped, tag = 'scoped memory for tpu_custom_call.1']
    #allocation4 [shape = 's32[1]{0}', space=sflag, size = 0x4, scoped, tag = 'scoped memory for tpu_custom_call.1']
    #allocation5 [shape = 's32[1]{0}', space=sflag, size = 0x4, scoped, tag = 'scoped memory for tpu_custom_call.1']
    #allocation6 [shape = 'u8[8192]{0}', space=vmem, size = 0x2000, scoped, tag = 'input window, operand 1, single buffered']
    #allocation7 [shape = 'u8[8192]{0}', space=vmem, size = 0x2000, scoped, tag = 'output window, operand 0, single buffered']
    %7 = vsyncpa [#allocation5], 0
    %8 = vsyncpa [#allocation3], 0
    %9 = vsyncpa [#allocation4], 0
    // Predicated region
    $region2: #{tpu_custom_call.1} parent=1 // pred_check
      _
    $region3: #{tpu_custom_call.1} parent=1 // pred_check_branch
      %11 = sbr.rel (0) target = $region5
    $region4: #{tpu_custom_call.1} parent=1 // pred_region
      %s13 = ssub.s32 16, 16
      %14 = vsyncadd [#allocation5], %s13
      %17 = dma.hbm_to_smem %s0, 16, [#allocation2], [#allocation5]
    $region5: #{tpu_custom_call.1} parent=1 // pred_fallthru
      _
    // Predicated region
    $region6: #{tpu_custom_call.1} parent=1 // pred_check
      _
    $region7: #{tpu_custom_call.1} parent=1 // pred_check_branch
      %19 = sbr.rel (0) target = $region9
    $region8: #{tpu_custom_call.1} parent=1 // pred_region
      %s21 = ssub.s32 256, 256
      %22 = vsyncadd [#allocation3], %s21
      %s24 = sshll.u32 [#allocation6], 4
      %s25 = int_to_ptr.vmem [resolvable:$true] %s24
      %27 = dma.hbm_to_vmem [thread:$0]  %s1, 256, %s25, [#allocation3]
    $region9: #{tpu_custom_call.1} parent=1 // pred_fallthru
      _
    // Predicated region
    $region10: #{tpu_custom_call.1} parent=1 // pred_check
      _
    $region11: #{tpu_custom_call.1} parent=1 // pred_check_branch
      %29 = sbr.rel (0) target = $region13
    $region12: #{tpu_custom_call.1} parent=1 // pred_region
      %30 = dma.done [#allocation5], 16
    $region13: #{tpu_custom_call.1} parent=1 // pred_fallthru
      _
    // Predicated region
    $region14: #{tpu_custom_call.1} parent=1 // pred_check
      _
    $region15: #{tpu_custom_call.1} parent=1 // pred_check_branch
      %32 = sbr.rel (0) target = $region17
    $region16: #{tpu_custom_call.1} parent=1 // pred_region
      %33 = dma.done [#allocation3], 256
    $region17: #{tpu_custom_call.1} parent=1 // pred_fallthru
      _
    %34 = sfence
    %v35 = vld [vmem:[#allocation6] sm:$0xff]
    %v36 = vld [vmem:[#allocation6 + $0x8] sm:$0xff]
    %s37 = sld [smem:[#allocation2]]
    %s38 = sld [smem:[#allocation2 + $0x1]]
    %v39 = vstv %s37
    %v40 = vmax.f32 %v35, %v39
    %v41 = vmax.f32 %v36, %v39
    %v42 = vstv %s38
    %v43 = vmin.f32 %v40, %v42
    %v44 = vmin.f32 %v41, %v42
    %45 = vst [vmem:[#allocation7] sm:$0xff] %v43
    %46 = vst [vmem:[#allocation7 + $0x8] sm:$0xff] %v44
    // Predicated region
    $region18: #{tpu_custom_call.1} parent=1 // pred_check
      _
    $region19: #{tpu_custom_call.1} parent=1 // pred_check_branch
      %48 = sbr.rel (0) target = $region21
    $region20: #{tpu_custom_call.1} parent=1 // pred_region
      %s50 = ssub.s32 256, 256
      %51 = vsyncadd [#allocation4], %s50
      %s53 = sshll.u32 [#allocation7], 4
      %s54 = int_to_ptr.vmem [resolvable:$true] %s53
      %56 = dma.vmem_to_hbm [thread:$0]  %s54, 256, %s2, [#allocation4]
    $region21: #{tpu_custom_call.1} parent=1 // pred_fallthru
      _
    // Predicated region
    $region22: #{tpu_custom_call.1} parent=1 // pred_check
      _
    $region23: #{tpu_custom_call.1} parent=1 // pred_check_branch
      %58 = sbr.rel (0) target = $region25
    $region24: #{tpu_custom_call.1} parent=1 // pred_region
      %59 = dma.done [#allocation4], 256
    $region25: #{tpu_custom_call.1} parent=1 // pred_fallthru
      _
    %60 = vsyncpa [#allocation3], 1
    %61 = vsyncpa [#allocation4], 1
    %62 = vsyncpa [#allocation5], 1

</llo_original>
